<compile_context>
chip_gen: v7x
topology: tpu7x:2x2x1
jax: 0.10.0
libtpu: 0.0.40
codegen_flags: <defaults>
</compile_context>

<pallas_src>
import math

import jax
import jax.numpy as jnp
from jax.experimental import pallas as pl
from jax.experimental.pallas import tpu as pltpu

_TARGET_BLOCK_BYTES = 4 * 1024 * 1024       # per-operand block byte target
_VMEM_LIMIT_BYTES = 48 * 1024 * 1024        # explicit scoped-VMEM budget (v5e..v7x safe)
_MAX_SINGLE_BLOCK_BYTES = 6 * 1024 * 1024   # ceiling for untileable (non-128-mult) cols
_SLAB_WIDTH_CAP = 1024                      # max lane width tried for the flatten path


def _add_kernel(x_ref, p_ref, o_ref):
    # Elementwise residual add on the current VMEM tile (VPU); dtype promotion is
    # fused here.  p_ref's block may have a single row (leading-axis broadcast) —
    # jnp broadcasting handles both layouts with the same body.
    o_ref[...] = x_ref[...].astype(o_ref.dtype) + p_ref[...].astype(o_ref.dtype)


def _cdiv(a, b):
    return -(-a // b)


def _sublane_granule(*dtypes):
    """Row-tile granule matching sublane packing: 8 (f32) / 16 (bf16) / 32 (i8/fp8)."""
    min_item = min(jnp.dtype(d).itemsize for d in dtypes)
    return 8 * max(1, 4 // max(min_item, 1))


def _tile_2d(rows, cols, itemsize, granule, block_bytes=_TARGET_BLOCK_BYTES):
    """Pick a lane-dense (tile_rows, tile_cols) block under the VMEM byte budget."""
    if cols % 128 == 0:
        max_cols = max(128, (block_bytes // max(granule * itemsize, 1)) // 128 * 128)
        tile_cols = min(cols, max_cols)
    else:
        tile_cols = cols  # full extent: exempt from the 128-divisibility rule
    row_budget = (block_bytes // max(tile_cols * itemsize, 1)) // granule * granule
    row_budget = max(granule, row_budget)
    tile_rows = min(rows, row_budget)
    # v7x has 2 TensorCores; make sure a "parallel" grid axis has >= 2 steps on
    # non-trivial inputs so both cores get work (harmless on 1-TC chips).
    if (tile_rows == rows and tile_cols == cols and rows >= 2 * granule
            and rows * cols * itemsize > (1 << 20)):
        tile_rows = _cdiv(_cdiv(rows, 2), granule) * granule
    return tile_rows, tile_cols


def _pallas_add_2d(x2, p2, out_dtype, *, bcast_rows):
    """out[r, c] = x2[r, c] + p2[0 if bcast_rows else r, c]."""
    rows, cols = x2.shape
    itemsize = max(x2.dtype.itemsize, p2.dtype.itemsize, jnp.dtype(out_dtype).itemsize)
    granule = _sublane_granule(x2.dtype, p2.dtype, out_dtype)
    tile_rows, tile_cols = _tile_2d(rows, cols, itemsize, granule)
    # Rows are the inner grid axis: in the broadcast case p's block index is constant
    # across it, so the pipeline re-uses the resident block instead of re-DMAing p.
    grid = (pl.cdiv(cols, tile_cols), pl.cdiv(rows, tile_rows))
    if bcast_rows:
        p_spec = pl.BlockSpec((1, tile_cols), lambda c, r: (0, c))
    else:
        p_spec = pl.BlockSpec((tile_rows, tile_cols), lambda c, r: (r, c))
    return pl.pallas_call(
        _add_kernel,
        out_shape=jax.ShapeDtypeStruct((rows, cols), out_dtype),
        grid_spec=pltpu.PrefetchScalarGridSpec(
            num_scalar_prefetch=0,
            grid=grid,
            in_specs=[
                pl.BlockSpec((tile_rows, tile_cols), lambda c, r: (r, c)),
                p_spec,
            ],
            out_specs=pl.BlockSpec((tile_rows, tile_cols), lambda c, r: (r, c)),
        ),
        compiler_params=pltpu.CompilerParams(
            dimension_semantics=("parallel", "parallel"),
            vmem_limit_bytes=_VMEM_LIMIT_BYTES),
    )(x2, p2)


def _as_slab(arr, itemsize):
    """Flatten a contiguous array into a lane-dense 2-D slab.

    Prefers a slab width that is a multiple of 128 AND divides the element count
    (no pad / final-slice HBM round trips).  Falls back to a single (1, total) block
    for small non-128-multiple sizes, and pads to 1024 lanes only as a last resort.
    Returns (slab, num_padded_elements).
    """
    total = arr.size
    flat = arr.reshape(-1)
    for c in range(_SLAB_WIDTH_CAP, 0, -128):
        if total % c == 0:
            return flat.reshape(total // c, c), 0
    if total * itemsize <= _TARGET_BLOCK_BYTES:
        return flat.reshape(1, total), 0
    c = _SLAB_WIDTH_CAP
    padded = _cdiv(total, c) * c
    flat = jnp.pad(flat, (0, padded - total))
    return flat.reshape(padded // c, c), padded - total


def _unslab(out2, pad, total, out_shape):
    out = out2.reshape(-1)
    if pad:
        out = out[:total]
    return out.reshape(out_shape)


def _add_same_shape(x, p, out_dtype, out_shape):
    itemsize = max(x.dtype.itemsize, p.dtype.itemsize, jnp.dtype(out_dtype).itemsize)
    x2, pad = _as_slab(x, itemsize)
    p2, _ = _as_slab(p, itemsize)          # same element count -> same slab shape
    out2 = _pallas_add_2d(x2, p2, out_dtype, bcast_rows=False)
    return _unslab(out2, pad, x.size, out_shape)


def _leading_broadcast_split(x_shape, p_shape):
    """If p broadcasts against x only over leading axes (right-aligned trailing dims
    equal, remaining p dims all 1), return (lead_dims, tail_dims); else None."""
    nd, pd = len(x_shape), len(p_shape)
    if pd == 0 or pd > nd:
        return None
    k = 0
    while k < pd and p_shape[pd - 1 - k] == x_shape[nd - 1 - k]:
        k += 1
    if k == 0 or any(d != 1 for d in p_shape[: pd - k]):
        return None
    return x_shape[: nd - k], x_shape[nd - k:]


def residual_connection(x, position_value):
    """PyTorch `residual_connection.forward`: x + position_value (with broadcasting)."""
    x = jnp.asarray(x)
    p = jnp.asarray(position_value)
    out_dtype = jnp.result_type(x.dtype, p.dtype)
    out_shape = jnp.broadcast_shapes(x.shape, p.shape)
    total = math.prod(out_shape)
    if total == 0:
        return jnp.zeros(out_shape, out_dtype)
    if x.shape != out_shape:
        # Rare: x itself broadcasts; materialize it (the position side stays lazy).
        x = jnp.broadcast_to(x, out_shape)
    itemsize = max(x.dtype.itemsize, p.dtype.itemsize, jnp.dtype(out_dtype).itemsize)

    if p.size == 1:
        # Scalar / all-singleton position value: materialize only one slab row
        # (a few KiB) and reuse it via the row-broadcast BlockSpec.
        x2, pad = _as_slab(x, itemsize)
        p_row = jnp.broadcast_to(p.reshape((1, 1)), (1, x2.shape[1]))
        out2 = _pallas_add_2d(x2, p_row, out_dtype, bcast_rows=True)
        return _unslab(out2, pad, total, out_shape)

    if p.shape == out_shape:
        return _add_same_shape(x, p, out_dtype, out_shape)

    split = _leading_broadcast_split(out_shape, p.shape)
    if split is not None:
        lead, tail = split
        L, F = math.prod(lead), math.prod(tail)
        granule = _sublane_granule(x.dtype, p.dtype, out_dtype)
        # Lane-dense flattening of the matching tail: the broadcast over L is expressed
        # through p's index_map (p's HBM bytes are read roughly once) and the output
        # blocks stay full-lane-width even when the hidden dim is < 128.
        feasible = (F % 128 == 0) or (granule * F * itemsize <= _MAX_SINGLE_BLOCK_BYTES)
        if feasible:
            out2 = _pallas_add_2d(x.reshape(L, F), p.reshape(1, F), out_dtype,
                                  bcast_rows=True)
            return out2.reshape(out_shape)

    # TODO(synk): interior-axis broadcasts (e.g. p of shape (B,1,H)) still materialize
    # p; they could be expressed with a constant block index on the broadcast grid axis.
    return _add_same_shape(x, jnp.broadcast_to(p, out_shape), out_dtype, out_shape)


if __name__ == "__main__":
    key = jax.random.PRNGKey(0)
    k1, k2, k3, k4 = jax.random.split(key, 4)

    fn = jax.jit(residual_connection)

    # 1) Natural module shape (batch=2, seq=8, hidden=32): same-shape residual add,
    #    flattened into a lane-dense (1, 512) slab (no pad, no slice).
    x = jax.random.normal(k1, (2, 8, 32), dtype=jnp.float32)
    pos = jax.random.normal(k2, (2, 8, 32), dtype=jnp.float32)
    out = jax.block_until_ready(fn(x, pos))
    ref = x + pos
    assert out.shape == ref.shape and out.dtype == ref.dtype
    assert jnp.allclose(out, ref, atol=1e-6, rtol=1e-6)

    # 2) Broadcast positional table (1, seq, hidden) with hidden < 128: broadcast via
    #    the BlockSpec index_map with lane-dense (L, seq*hidden) blocks.
    pb = jax.random.normal(k3, (1, 8, 32), dtype=jnp.float32)
    outb = jax.block_until_ready(fn(x, pb))
    assert jnp.allclose(outb, x + pb, atol=1e-6, rtol=1e-6)

    # 3) bf16 path with hidden a multiple of 128: exercises the 16-row sublane granule.
    xa = jax.random.normal(k4, (2, 16, 256), dtype=jnp.bfloat16)
    pa = jax.random.normal(k1, (2, 16, 256), dtype=jnp.bfloat16)
    outa = jax.block_until_ready(fn(xa, pa))
    assert jnp.allclose(outa.astype(jnp.float32), (xa + pa).astype(jnp.float32),
                        atol=1e-2, rtol=1e-2)

    # 4) Scalar position value.
    outs = jax.block_until_ready(fn(x, jnp.float32(0.5)))
    assert jnp.allclose(outs, x + 0.5, atol=1e-6, rtol=1e-6)

    print("KERNEL_OK")
</pallas_src>

<mosaic_0001>
module attributes {stable_mosaic.version = 11 : i64} {
  func.func @_add_kernel(%arg0: i32, %arg1: i32, %arg2: memref<1x512xf32, #tpu.memory_space<vmem>>, %arg3: memref<1x512xf32, #tpu.memory_space<vmem>>, %arg4: memref<1x512xf32, #tpu.memory_space<vmem>>) attributes {dimension_semantics = [#tpu.dimension_semantics<parallel>, #tpu.dimension_semantics<parallel>], iteration_bounds = array<i64: 1, 1>, scalar_prefetch = 0 : i64, scratch_operands = 0 : i64, tpu.core_type = #tpu.core_type<tc>, window_params = [{transform_indices = @transform_0, window_bounds = array<i64: 1, 512>}, {transform_indices = @transform_1, window_bounds = array<i64: 1, 512>}, {transform_indices = @transform_2, window_bounds = array<i64: 1, 512>}]} {
    %c0 = arith.constant 0 : index
    %c0_0 = arith.constant 0 : index
    %0 = vector.load %arg2[%c0, %c0_0] : memref<1x512xf32, #tpu.memory_space<vmem>>, vector<1x512xf32>
    %c0_1 = arith.constant 0 : index
    %c0_2 = arith.constant 0 : index
    %1 = vector.load %arg3[%c0_1, %c0_2] : memref<1x512xf32, #tpu.memory_space<vmem>>, vector<1x512xf32>
    %2 = arith.addf %0, %1 : vector<1x512xf32>
    %c0_3 = arith.constant 0 : index
    %c0_4 = arith.constant 0 : index
    %3 = vector.load %arg4[%c0_3, %c0_4] : memref<1x512xf32, #tpu.memory_space<vmem>>, vector<1x512xf32>
    tpu.vector_store %arg4[%c0_3, %c0_4], %2 {strides = array<i32>} : memref<1x512xf32, #tpu.memory_space<vmem>>, vector<1x512xf32>,
    return
  }
  func.func @transform_0(%arg0: i32, %arg1: i32) -> (i32, i32) {
    %c0_i32 = arith.constant 0 : i32
    return %arg1, %arg0 : i32, i32
  }
  func.func @transform_1(%arg0: i32, %arg1: i32) -> (i32, i32) {
    %c0_i32 = arith.constant 0 : i32
    return %arg1, %arg0 : i32, i32
  }
  func.func @transform_2(%arg0: i32, %arg1: i32) -> (i32, i32) {
    %c0_i32 = arith.constant 0 : i32
    return %arg1, %arg0 : i32, i32
  }
}

</mosaic_0001>

<llo_original>
// kernel: residual_connection.1
$region0: #{residual_connection.1}
  #allocation0 [shape = 'u32[]', space=smem, size = 0x4, offset = 0x4, fixed_abs, tag = 'smem constant byte address 0x4 - core index']
  #allocation1 [shape = 'u32[144,128]{1,0:T(1,128)}', space=vmem, size = 0x12000, scoped, tag = 'internal scratch']
  %s0 = inlined_call_operand.vmem [shape: f32[1,512], index: 0, kind: input, shape index: {}]
  %s1 = inlined_call_operand.vmem [shape: f32[1,512], index: 1, kind: input, shape index: {}]
  %s2 = inlined_call_operand.vmem [shape: f32[1,512], index: 2, kind: output, shape index: {}]
  %s3 = sld [smem:[#allocation0]]
  $region18: #{residual_connection.1} parent=0
    _
  %s5 = ssub.s32 1, %s3
  %s6 = scalar_select 0, %s5, %s3
  // Predicated region
  $region2: #{residual_connection.1} parent=0 // pred_check
    _
  $region3: #{residual_connection.1} parent=0 // pred_check_branch
    %8 = sbr.rel (0) target = $region5
  $region4: #{residual_connection.1} parent=0 // pred_region
    _
  $region5: #{residual_connection.1} parent=0 // pred_fallthru
    _
  // Predicated region
  $region6: #{residual_connection.1} parent=0 // pred_check
    _
  $region7: #{residual_connection.1} parent=0 // pred_check_branch
    %10 = sbr.rel (0) target = $region9
  $region8: #{residual_connection.1} parent=0 // pred_region
    _
  $region9: #{residual_connection.1} parent=0 // pred_fallthru
    _
  %v11 = vld [vmem:[%s0] sm:$0xf]
  %v12 = vld [vmem:[%s1] sm:$0xf]
  %v13 = vadd.f32 %v11, %v12
  %v14 = vlaneseq
  %vm15 = vcmp.ge.s32.totalorder %v14, 0
  %vm16 = vcmp.lt.s32.totalorder %v14, 512
  %vm17 = vmand %vm15, %vm16
  %18 = vst.msk [vmem:[%s2] sm:$0xf] %vm17, %v13
  // Predicated region
  $region10: #{residual_connection.1} parent=0 // pred_check
    _
  $region11: #{residual_connection.1} parent=0 // pred_check_branch
    %20 = sbr.rel (0) target = $region13
  $region12: #{residual_connection.1} parent=0 // pred_region
    _
  $region13: #{residual_connection.1} parent=0 // pred_fallthru
    _
  // Predicated region
  $region14: #{residual_connection.1} parent=0 // pred_check
    _
  $region15: #{residual_connection.1} parent=0 // pred_check_branch
    %22 = sbr.rel (0) target = $region17
  $region16: #{residual_connection.1} parent=0 // pred_region
    _
  $region17: #{residual_connection.1} parent=0 // pred_fallthru
    _

</llo_original>
